<compile_context>
chip_gen: v7x
topology: tpu7x:2x2x1
jax: 0.10.0
libtpu: 0.0.40
codegen_flags: <defaults>
</compile_context>

<pallas_src>
import functools
import math

import numpy as np
import jax
import jax.numpy as jnp
from jax.experimental import pallas as pl
from jax.experimental.pallas import tpu as pltpu


def _bias_free_ln_kernel(x_ref, w_ref, o_ref, *, P, C, inv_c, eps):
    """x_ref/o_ref: (tr, L) packed slab, each row = P tokens x C channels (L = P*C, L % 128 == 0).
    w_ref: (1, L) f32 weight tiled P times."""
    L = P * C
    x = x_ref[...].astype(jnp.float32)                                  # (tr, L)

    if P == 1:
        # Whole row is one token: plain lane reduction (XLU), no masks needed.
        s1 = jnp.sum(x, axis=-1, keepdims=True)                         # (tr, 1)
        s2 = jnp.sum(x * x, axis=-1, keepdims=True)                     # (tr, 1)
        mean = s1 * inv_c
        var = jnp.maximum(s2 * inv_c - mean * mean, 0.0)                # biased (ddof=0)
        scale_b = jax.lax.rsqrt(var + eps)                              # (tr, 1) -> broadcasts
    else:
        Pm = max(P, 8)  # pad group axis of the tiny matmuls to >= 8 columns
        # 0/1 segment masks built in-registers (no HBM input, no transpose):
        #   segT[l, t] = 1  iff lane l belongs to token-slot t         (L, Pm)
        #   seg [t, l] = segT^T                                        (Pm, L)
        lane_t = jax.lax.broadcasted_iota(jnp.int32, (L, Pm), 0)
        grp_t = jax.lax.broadcasted_iota(jnp.int32, (L, Pm), 1)
        segT = jnp.where((lane_t >= grp_t * C) & (lane_t < (grp_t + 1) * C), 1.0, 0.0)
        lane = jax.lax.broadcasted_iota(jnp.int32, (Pm, L), 1)
        grp = jax.lax.broadcasted_iota(jnp.int32, (Pm, L), 0)
        seg = jnp.where((lane >= grp * C) & (lane < (grp + 1) * C), 1.0, 0.0)

        # Segment sums on the (otherwise idle) MXU: one fused sweep gives E[x] and E[x^2].
        s1 = jnp.dot(x, segT, preferred_element_type=jnp.float32)       # (tr, Pm)
        s2 = jnp.dot(x * x, segT, preferred_element_type=jnp.float32)   # (tr, Pm)
        mean = s1 * inv_c
        var = jnp.maximum(s2 * inv_c - mean * mean, 0.0)                # biased (ddof=0)
        scale = jax.lax.rsqrt(var + eps)                                # (tr, Pm), EUP
        # Broadcast per-token scale back into the packed layout (padded groups hit zero rows).
        scale_b = jnp.dot(scale, seg, preferred_element_type=jnp.float32)   # (tr, L)

    # BiasFree_LayerNorm: scale raw x (NOT x - mean), multiply by weight, no bias.
    o_ref[...] = (x * scale_b * w_ref[...]).astype(o_ref.dtype)


def _round_up(a, b):
    return -(-a // b) * b


def bias_free_layernorm(x, weight, *, eps=1e-5, target_block_bytes=2 << 20):
    """BiasFree_LayerNorm over the last dim of x.  weight: (C,)."""
    orig_shape = x.shape
    orig_dtype = x.dtype
    C = int(orig_shape[-1])
    M = x.size // C

    # Pack P tokens per row so the row width L = P*C is a multiple of 128 (lane-dense stores).
    P = 128 // math.gcd(C, 128)
    L = P * C

    itemsize = x.dtype.itemsize
    sub = max(8, 32 // itemsize)            # sublane multiple: 8 (f32), 16 (bf16), 32 (int8)

    x2d = x.reshape(M, C)                   # keep original dtype; cast happens inside the kernel
    M_pad = _round_up(M, P)
    if M_pad != M:                          # zero token rows are benign (rsqrt(eps)*0) and sliced off
        x2d = jnp.pad(x2d, ((0, M_pad - M), (0, 0)))
    Mp = M_pad // P
    x_packed = x2d.reshape(Mp, L)           # contiguous reshape: free, no data movement

    w_tiled = jnp.tile(weight.astype(jnp.float32).reshape(1, C), (1, P))   # (1, L)

    # Row block: ~target_block_bytes of x, multiple of `sub`, capped at ~half the rows so the
    # "parallel" grid has >= 2 steps (feeds both v7x TensorCores).  Non-dividing tails are fine:
    # the math is row-independent and Pallas masks out-of-range writes.
    if Mp <= sub:
        tr = Mp                             # single block; block dim == full array dim
    else:
        by_bytes = max(sub, (target_block_bytes // (L * itemsize)) // sub * sub)
        half = _round_up(-(-Mp // 2), sub)
        tr = max(sub, min(by_bytes, half))
    grid = (pl.cdiv(Mp, tr),)

    kernel = functools.partial(_bias_free_ln_kernel, P=P, C=C, inv_c=1.0 / C, eps=float(eps))
    out_packed = pl.pallas_call(
        kernel,
        grid=grid,
        in_specs=[
            pl.BlockSpec((tr, L), lambda i: (i, 0)),
            pl.BlockSpec((1, L), lambda i: (0, 0)),   # constant block: fetched once
        ],
        out_specs=pl.BlockSpec((tr, L), lambda i: (i, 0)),
        out_shape=jax.ShapeDtypeStruct((Mp, L), orig_dtype),
        compiler_params=pltpu.CompilerParams(
            dimension_semantics=("parallel",),
            vmem_limit_bytes=32 << 20),
    )(x_packed, w_tiled)

    out = out_packed.reshape(M_pad, C)
    if M_pad != M:
        out = out[:M]
    return out.reshape(orig_shape)


def _reference(x, weight, eps=1e-5):
    xf = x.astype(jnp.float32)
    var = jnp.var(xf, axis=-1, keepdims=True)          # ddof=0 == torch var(unbiased=False)
    return (xf / jnp.sqrt(var + eps) * weight.astype(jnp.float32)).astype(x.dtype)


if __name__ == "__main__":
    key = jax.random.PRNGKey(0)
    k1, k2, k3, k4, k5, k6, k7, k8 = jax.random.split(key, 8)

    fwd = jax.jit(bias_free_layernorm)

    # Primary instantiation: the shape this LayerNorm sees inside MPT's TransformerBlock
    # (to_3d tokens of an 8x8 feature map with dim=16): (B, H*W, C) = (2, 64, 16).
    x = jax.random.normal(k1, (2, 64, 16), dtype=jnp.float32)
    w = 1.0 + 0.05 * jax.random.normal(k2, (16,), dtype=jnp.float32)
    out = jax.block_until_ready(fwd(x, w))
    np.testing.assert_allclose(np.asarray(out), np.asarray(_reference(x, w)),
                               rtol=2e-5, atol=2e-5)
    assert out.shape == x.shape and out.dtype == x.dtype

    # Multi-block grid + a C that does not divide 128 (P = 8, L = 384).
    x2 = jax.random.normal(k3, (4, 32, 32, 48), dtype=jnp.float32)
    w2 = 1.0 + 0.05 * jax.random.normal(k4, (48,), dtype=jnp.float32)
    out2 = jax.block_until_ready(fwd(x2, w2))
    np.testing.assert_allclose(np.asarray(out2), np.asarray(_reference(x2, w2)),
                               rtol=2e-5, atol=2e-5)

    # bf16 input: dtype cast happens inside the kernel, output dtype preserved.
    x3 = jax.random.normal(k5, (2, 256, 64), dtype=jnp.bfloat16)
    w3 = (1.0 + 0.05 * jax.random.normal(k6, (64,), dtype=jnp.float32)).astype(jnp.bfloat16)
    out3 = jax.block_until_ready(fwd(x3, w3))
    np.testing.assert_allclose(np.asarray(out3, dtype=np.float32),
                               np.asarray(_reference(x3, w3), dtype=np.float32),
                               rtol=2e-2, atol=2e-2)
    assert out3.dtype == x3.dtype

    # C multiple of 128 exercises the P == 1 (plain lane-reduction) path.
    x4 = jax.random.normal(k7, (2, 64, 128), dtype=jnp.float32)
    w4 = 1.0 + 0.05 * jax.random.normal(k8, (128,), dtype=jnp.float32)
    out4 = jax.block_until_ready(fwd(x4, w4))
    np.testing.assert_allclose(np.asarray(out4), np.asarray(_reference(x4, w4)),
                               rtol=2e-5, atol=2e-5)

    print("KERNEL_OK")
</pallas_src>

<mosaic_0001>
module attributes {stable_mosaic.version = 11 : i64} {
  func.func @_bias_free_ln_kernel(%arg0: i32, %arg1: memref<8x128xf32, #tpu.memory_space<vmem>>, %arg2: memref<1x128xf32, #tpu.memory_space<vmem>>, %arg3: memref<8x128xf32, #tpu.memory_space<vmem>>) attributes {dimension_semantics = [#tpu.dimension_semantics<parallel>], iteration_bounds = array<i64: 2>, scalar_prefetch = 0 : i64, scratch_operands = 0 : i64, tpu.core_type = #tpu.core_type<tc>, window_params = [{transform_indices = @transform_0, window_bounds = array<i64: 8, 128>}, {pipeline_mode = #tpu.pipeline_mode<synchronous>, transform_indices = @transform_1, window_bounds = array<i64: 1, 128>}, {transform_indices = @transform_2, window_bounds = array<i64: 8, 128>}]} {
    %c0 = arith.constant 0 : index
    %c0_0 = arith.constant 0 : index
    %0 = vector.load %arg1[%c0, %c0_0] : memref<8x128xf32, #tpu.memory_space<vmem>>, vector<8x128xf32>
    %1 = tpu.iota {dimensions = array<i32: 0>} : vector<128x8xi32>
    %2 = tpu.iota {dimensions = array<i32: 1>} : vector<128x8xi32>
    %c16_i32 = arith.constant 16 : i32
    %3 = vector.broadcast %c16_i32 : i32 to vector<128x8xi32>
    %4 = arith.muli %2, %3 : vector<128x8xi32>
    %5 = arith.cmpi sge, %1, %4 : vector<128x8xi32>
    %c1_i32 = arith.constant 1 : i32
    %6 = vector.broadcast %c1_i32 : i32 to vector<128x8xi32>
    %7 = arith.addi %2, %6 : vector<128x8xi32>
    %c16_i32_1 = arith.constant 16 : i32
    %8 = vector.broadcast %c16_i32_1 : i32 to vector<128x8xi32>
    %9 = arith.muli %7, %8 : vector<128x8xi32>
    %10 = arith.cmpi slt, %1, %9 : vector<128x8xi32>
    %11 = arith.andi %5, %10 : vector<128x8xi1>
    %cst = arith.constant 1.000000e+00 : f32
    %cst_2 = arith.constant 0.000000e+00 : f32
    %12 = vector.broadcast %cst : f32 to vector<128x8xf32>
    %13 = vector.broadcast %cst_2 : f32 to vector<128x8xf32>
    %14 = arith.select %11, %12, %13 : vector<128x8xi1>, vector<128x8xf32>
    %15 = tpu.iota {dimensions = array<i32: 1>} : vector<8x128xi32>
    %16 = tpu.iota {dimensions = array<i32: 0>} : vector<8x128xi32>
    %c16_i32_3 = arith.constant 16 : i32
    %17 = vector.broadcast %c16_i32_3 : i32 to vector<8x128xi32>
    %18 = arith.muli %16, %17 : vector<8x128xi32>
    %19 = arith.cmpi sge, %15, %18 : vector<8x128xi32>
    %c1_i32_4 = arith.constant 1 : i32
    %20 = vector.broadcast %c1_i32_4 : i32 to vector<8x128xi32>
    %21 = arith.addi %16, %20 : vector<8x128xi32>
    %c16_i32_5 = arith.constant 16 : i32
    %22 = vector.broadcast %c16_i32_5 : i32 to vector<8x128xi32>
    %23 = arith.muli %21, %22 : vector<8x128xi32>
    %24 = arith.cmpi slt, %15, %23 : vector<8x128xi32>
    %25 = arith.andi %19, %24 : vector<8x128xi1>
    %cst_6 = arith.constant 1.000000e+00 : f32
    %cst_7 = arith.constant 0.000000e+00 : f32
    %26 = vector.broadcast %cst_6 : f32 to vector<8x128xf32>
    %27 = vector.broadcast %cst_7 : f32 to vector<8x128xf32>
    %28 = arith.select %25, %26, %27 : vector<8x128xi1>, vector<8x128xf32>
    %cst_8 = arith.constant dense<0.000000e+00> : vector<8x8xf32>
    %29 = tpu.matmul %0, %14, %cst_8 {dimension_numbers = #tpu.dot_dimension_numbers<[1], [0], [0], [1], [0, 0, 1, 1], [], []>} : vector<8x128xf32>, vector<128x8xf32>, vector<8x8xf32> -> vector<8x8xf32>
    %30 = arith.mulf %0, %0 : vector<8x128xf32>
    %cst_9 = arith.constant dense<0.000000e+00> : vector<8x8xf32>
    %31 = tpu.matmul %30, %14, %cst_9 {dimension_numbers = #tpu.dot_dimension_numbers<[1], [0], [0], [1], [0, 0, 1, 1], [], []>} : vector<8x128xf32>, vector<128x8xf32>, vector<8x8xf32> -> vector<8x8xf32>
    %cst_10 = arith.constant 6.250000e-02 : f32
    %32 = vector.broadcast %cst_10 : f32 to vector<8x8xf32>
    %33 = arith.mulf %29, %32 : vector<8x8xf32>
    %cst_11 = arith.constant 6.250000e-02 : f32
    %34 = vector.broadcast %cst_11 : f32 to vector<8x8xf32>
    %35 = arith.mulf %31, %34 : vector<8x8xf32>
    %36 = arith.mulf %33, %33 : vector<8x8xf32>
    %37 = arith.subf %35, %36 : vector<8x8xf32>
    %cst_12 = arith.constant 0.000000e+00 : f32
    %38 = vector.broadcast %cst_12 : f32 to vector<8x8xf32>
    %39 = arith.maximumf %37, %38 : vector<8x8xf32>
    %cst_13 = arith.constant 9.99999974E-6 : f32
    %40 = vector.broadcast %cst_13 : f32 to vector<8x8xf32>
    %41 = arith.addf %39, %40 : vector<8x8xf32>
    %42 = math.rsqrt %41 : vector<8x8xf32>
    %cst_14 = arith.constant dense<0.000000e+00> : vector<8x128xf32>
    %43 = tpu.matmul %42, %28, %cst_14 {dimension_numbers = #tpu.dot_dimension_numbers<[1], [0], [0], [1], [0, 0, 1, 1], [], []>} : vector<8x8xf32>, vector<8x128xf32>, vector<8x128xf32> -> vector<8x128xf32>
    %44 = arith.mulf %0, %43 : vector<8x128xf32>
    %c0_15 = arith.constant 0 : index
    %c0_16 = arith.constant 0 : index
    %45 = vector.load %arg2[%c0_15, %c0_16] : memref<1x128xf32, #tpu.memory_space<vmem>>, vector<1x128xf32>
    %46 = vector.broadcast %45 : vector<1x128xf32> to vector<8x128xf32>
    %47 = arith.mulf %44, %46 : vector<8x128xf32>
    %c0_17 = arith.constant 0 : index
    %c0_18 = arith.constant 0 : index
    %48 = vector.load %arg3[%c0_17, %c0_18] : memref<8x128xf32, #tpu.memory_space<vmem>>, vector<8x128xf32>
    tpu.vector_store %arg3[%c0_17, %c0_18], %47 {strides = array<i32>} : memref<8x128xf32, #tpu.memory_space<vmem>>, vector<8x128xf32>,
    return
  }
  func.func @transform_0(%arg0: i32) -> (i32, i32) {
    %c0_i32 = arith.constant 0 : i32
    %c0_i32_0 = arith.constant 0 : i32
    return %arg0, %c0_i32 : i32, i32
  }
  func.func @transform_1(%arg0: i32) -> (i32, i32) {
    %c0_i32 = arith.constant 0 : i32
    %c0_i32_0 = arith.constant 0 : i32
    %c0_i32_1 = arith.constant 0 : i32
    return %c0_i32, %c0_i32_0 : i32, i32
  }
  func.func @transform_2(%arg0: i32) -> (i32, i32) {
    %c0_i32 = arith.constant 0 : i32
    %c0_i32_0 = arith.constant 0 : i32
    return %arg0, %c0_i32 : i32, i32
  }
}

</mosaic_0001>

<llo_original>
// kernel: bias_free_layernorm.1
$region0: #{bias_free_layernorm.1}
  #allocation0 [shape = 'u32[]', space=smem, size = 0x4, offset = 0x4, fixed_abs, tag = 'smem constant byte address 0x4 - core index']
  #allocation1 [shape = 'u32[144,128]{1,0:T(1,128)}', space=vmem, size = 0x12000, scoped, tag = 'internal scratch']
  %s0 = inlined_call_operand.vmem [shape: f32[16,128], index: 0, kind: input, shape index: {}]
  %s1 = inlined_call_operand.vmem [shape: f32[1,128], index: 1, kind: input, shape index: {}]
  %s2 = inlined_call_operand.vmem [shape: f32[16,128], index: 2, kind: output, shape index: {}]
  %s3 = sld [smem:[#allocation0]]
  $region41: #{bias_free_layernorm.1} parent=0
    _
  %s5 = ssub.s32 1, %s3
  %s6 = scalar_select 0, %s5, %s3
  loop: start=0, step=1, limit=4
  $region2: #{bias_free_layernorm.1} parent=0 // loop_pre_header
    _
  $region3: #{bias_free_layernorm.1} parent=0 // loop_header
    %s8 = sphi 0, %s12
    %p9 = scmp.ge.s32.totalorder %s8, 4
    %s18 = sphi 0, %s20
    %s21 = sphi 0, %s18
    %s22 = sphi 0, %s21
    %s38 = sphi 0, %s22
    %s42 = sphi 0, %s42
    %s44 = sphi 0, %s42
    %s45 = sphi 0, %s44
    %s59 = sphi 0, %s45
    %s65 = sphi 0, %s67
    %s68 = sphi 0, %s65
    %s69 = sphi 0, %s68
    %s85 = sphi 0, %s69
  $region4: #{bias_free_layernorm.1} parent=0 // loop_header_branch
    %11 = sbr.rel (%p9) target = $region8
  $region5: #{bias_free_layernorm.1} parent=0 // loop_body
    %s13 = ssub.s32 %s8, 1
    %s14 = ssub.s32 %s8, 2
    %s15 = sadd.s32 %s8, 1
    %s16 = ssub.s32 %s8, %s15
    %p17 = scmp.eq.s32.totalorder %s16, 0
    %s19 = sadd.s32 %s18, 1
    %s20 = scalar_select %p17, %s18, %s19
    %p23 = pneg %p17
    %p24 = scmp.eq.s32.totalorder %s8, 1
    %p25 = por %p23, %p24
    %p26 = scmp.ne.s32.totalorder %s18, %s21
    %p27 = scmp.eq.s32.totalorder %s8, 0
    %p28 = por %p26, %p27
    %p29 = scmp.ne.s32.totalorder %s18, %s21
    %p30 = scmp.eq.s32.totalorder %s13, 1
    %p31 = por %p29, %p30
    %p32 = scmp.ne.s32.totalorder %s21, %s22
    %p33 = scmp.eq.s32.totalorder %s13, 0
    %p34 = por %p32, %p33
    %p35 = scmp.ne.s32.totalorder %s21, %s22
    %p36 = scmp.eq.s32.totalorder %s14, 1
    %p37 = por %p35, %p36
    %p39 = scmp.ne.s32.totalorder %s22, %s38
    %p40 = scmp.eq.s32.totalorder %s14, 0
    %p41 = por %p39, %p40
    %s43 = sadd.s32 %s42, 1
    %p46 = scmp.eq.s32.totalorder %s8, 1
    %p47 = scmp.ne.s32.totalorder %s42, %s44
    %p48 = scmp.eq.s32.totalorder %s8, 0
    %p49 = por %p47, %p48
    %p50 = scmp.ne.s32.totalorder %s42, %s44
    %p51 = scmp.eq.s32.totalorder %s13, 1
    %p52 = por %p50, %p51
    %p53 = scmp.ne.s32.totalorder %s44, %s45
    %p54 = scmp.eq.s32.totalorder %s13, 0
    %p55 = por %p53, %p54
    %p56 = scmp.ne.s32.totalorder %s44, %s45
    %p57 = scmp.eq.s32.totalorder %s14, 1
    %p58 = por %p56, %p57
    %p60 = scmp.ne.s32.totalorder %s45, %s59
    %p61 = scmp.eq.s32.totalorder %s14, 0
    %p62 = por %p60, %p61
    %s63 = ssub.s32 %s8, %s15
    %p64 = scmp.eq.s32.totalorder %s63, 0
    %s66 = sadd.s32 %s65, 1
    %s67 = scalar_select %p64, %s65, %s66
    %p70 = pneg %p64
    %p71 = scmp.eq.s32.totalorder %s8, 1
    %p72 = por %p70, %p71
    %p73 = scmp.ne.s32.totalorder %s65, %s68
    %p74 = scmp.eq.s32.totalorder %s8, 0
    %p75 = por %p73, %p74
    %p76 = scmp.ne.s32.totalorder %s65, %s68
    %p77 = scmp.eq.s32.totalorder %s13, 1
    %p78 = por %p76, %p77
    %p79 = scmp.ne.s32.totalorder %s68, %s69
    %p80 = scmp.eq.s32.totalorder %s13, 0
    %p81 = por %p79, %p80
    %p82 = scmp.ne.s32.totalorder %s68, %s69
    %p83 = scmp.eq.s32.totalorder %s14, 1
    %p84 = por %p82, %p83
    %p86 = scmp.ne.s32.totalorder %s69, %s85
    %p87 = scmp.eq.s32.totalorder %s14, 0
    %p88 = por %p86, %p87
    %p89 = scmp.le.s32.totalorder 1, %s8
    %p90 = scmp.lt.s32.totalorder %s8, 3
    %p91 = pnand %p89, %p90
    %p92 = pneg %p91
    // Predicated region
    $region9: #{bias_free_layernorm.1} parent=5 // pred_check
      _
    $region10: #{bias_free_layernorm.1} parent=5 // pred_check_branch
      %94 = sbr.rel (%p91) target = $region12
    $region11: #{bias_free_layernorm.1} parent=5 // pred_region
      %s95 = ssub.s32 %s8, 1
      // Predicated region
      $region13: #{bias_free_layernorm.1} parent=11 // pred_check
        %p96 = pneg %p55
      $region14: #{bias_free_layernorm.1} parent=11 // pred_check_branch
        %98 = sbr.rel (%p96) target = $region16
      $region15: #{bias_free_layernorm.1} parent=11 // pred_region
        _
      $region16: #{bias_free_layernorm.1} parent=11 // pred_fallthru
        _
    $region12: #{bias_free_layernorm.1} parent=5 // pred_fallthru
      _
    %p99 = scmp.lt.s32.totalorder %s8, 2
    // Predicated region
    $region17: #{bias_free_layernorm.1} parent=5 // pred_check
      %p100 = pneg %p99
    $region18: #{bias_free_layernorm.1} parent=5 // pred_check_branch
      %102 = sbr.rel (%p100) target = $region20
    $region19: #{bias_free_layernorm.1} parent=5 // pred_region
      // Predicated region
      $region21: #{bias_free_layernorm.1} parent=19 // pred_check
        %p103 = pneg %p28
      $region22: #{bias_free_layernorm.1} parent=19 // pred_check_branch
        %105 = sbr.rel (%p103) target = $region24
      $region23: #{bias_free_layernorm.1} parent=19 // pred_region
        %p106 = scmp.lt.s32.totalorder %s8, 1
        %s107 = scalar_select %p106, %s8, 1
        %s108 = smul.addr %s107, 8
        %s109 = scalar_lea.vmem %s0, %s108
      $region24: #{bias_free_layernorm.1} parent=19 // pred_fallthru
        _
    $region20: #{bias_free_layernorm.1} parent=5 // pred_fallthru
      _
    %p110 = scmp.le.s32.totalorder 1, %s8
    %p111 = scmp.lt.s32.totalorder %s8, 3
    %p112 = pnand %p110, %p111
    %p113 = pneg %p112
    // Predicated region
    $region25: #{bias_free_layernorm.1} parent=5 // pred_check
      _
    $region26: #{bias_free_layernorm.1} parent=5 // pred_check_branch
      %115 = sbr.rel (%p112) target = $region28
    $region27: #{bias_free_layernorm.1} parent=5 // pred_region
      %s116 = ssub.s32 %s8, 1
      %p117 = scmp.lt.s32.totalorder %s13, 1
      %s118 = scalar_select %p117, %s13, 1
      %s119 = smul.addr %s118, 8
      %s120 = scalar_lea.vmem %s0, %s119
      %p121 = pneg %p34
      %p122 = pneg %p31
      %p123 = pneg %p55
      %p124 = pneg %p52
      %p125 = pneg %p81
      %p126 = pneg %p78
      %p127 = scmp.lt.s32.totalorder %s13, 1
      %s128 = scalar_select %p127, %s13, 1
      %s129 = smul.addr %s128, 8
      %s130 = scalar_lea.vmem %s2, %s129
      %p131 = scmp.lt.s32.totalorder %s13, 1
      %s132 = scalar_select %p131, %s13, 1
      %s133 = smul.addr %s132, 8
      %s134 = scalar_lea.vmem %s0, %s133
      %p135 = scmp.lt.s32.totalorder %s13, 1
      %s136 = scalar_select %p135, %s13, 1
      %s137 = smul.addr %s136, 8
      %s138 = scalar_lea.vmem %s2, %s137
      %v139 = vld [vmem:[%s134] sm:$0xff]
      %v140 = vlaneseq
      %v141 = vshrl.u32 %v140, 7
      %v142 = vadd.s32 %v141, 8
      %v143 = vadd.s32 %v141, 16
      %v144 = vadd.s32 %v141, 24
      %v145 = vadd.s32 %v141, 32
      %v146 = vadd.s32 %v141, 40
      %v147 = vadd.s32 %v141, 48
      %v148 = vadd.s32 %v141, 56
      %v149 = vadd.s32 %v141, 64
      %v150 = vadd.s32 %v141, 72
      %v151 = vadd.s32 %v141, 80
      %v152 = vadd.s32 %v141, 88
      %v153 = vadd.s32 %v141, 96
      %v154 = vadd.s32 %v141, 104
      %v155 = vadd.s32 %v141, 112
      %v156 = vadd.s32 %v141, 120
      %v157 = vlaneseq
      %v158 = vand.u32 %v157, 127
      %v159 = vmul.u32 %v158, 16
      %vm160 = vcmp.ge.s32.totalorder %v141, %v159
      %vm161 = vcmp.ge.s32.totalorder %v142, %v159
      %vm162 = vcmp.ge.s32.totalorder %v143, %v159
      %vm163 = vcmp.ge.s32.totalorder %v144, %v159
      %vm164 = vcmp.ge.s32.totalorder %v145, %v159
      %vm165 = vcmp.ge.s32.totalorder %v146, %v159
      %vm166 = vcmp.ge.s32.totalorder %v147, %v159
      %vm167 = vcmp.ge.s32.totalorder %v148, %v159
      %vm168 = vcmp.ge.s32.totalorder %v149, %v159
      %vm169 = vcmp.ge.s32.totalorder %v150, %v159
      %vm170 = vcmp.ge.s32.totalorder %v151, %v159
      %vm171 = vcmp.ge.s32.totalorder %v152, %v159
      %vm172 = vcmp.ge.s32.totalorder %v153, %v159
      %vm173 = vcmp.ge.s32.totalorder %v154, %v159
      %vm174 = vcmp.ge.s32.totalorder %v155, %v159
      %vm175 = vcmp.ge.s32.totalorder %v156, %v159
      %v176 = vadd.s32 %v158, 1
      %v177 = vmul.u32 %v176, 16
      %vm178 = vcmp.lt.s32.totalorder %v141, %v177
      %vm179 = vcmp.lt.s32.totalorder %v142, %v177
      %vm180 = vcmp.lt.s32.totalorder %v143, %v177
      %vm181 = vcmp.lt.s32.totalorder %v144, %v177
      %vm182 = vcmp.lt.s32.totalorder %v145, %v177
      %vm183 = vcmp.lt.s32.totalorder %v146, %v177
      %vm184 = vcmp.lt.s32.totalorder %v147, %v177
      %vm185 = vcmp.lt.s32.totalorder %v148, %v177
      %vm186 = vcmp.lt.s32.totalorder %v149, %v177
      %vm187 = vcmp.lt.s32.totalorder %v150, %v177
      %vm188 = vcmp.lt.s32.totalorder %v151, %v177
      %vm189 = vcmp.lt.s32.totalorder %v152, %v177
      %vm190 = vcmp.lt.s32.totalorder %v153, %v177
      %vm191 = vcmp.lt.s32.totalorder %v154, %v177
      %vm192 = vcmp.lt.s32.totalorder %v155, %v177
      %vm193 = vcmp.lt.s32.totalorder %v156, %v177
      %vm194 = vmand %vm160, %vm178
      %vm195 = vmand %vm161, %vm179
      %vm196 = vmand %vm162, %vm180
      %vm197 = vmand %vm163, %vm181
      %vm198 = vmand %vm164, %vm182
      %vm199 = vmand %vm165, %vm183
      %vm200 = vmand %vm166, %vm184
      %vm201 = vmand %vm167, %vm185
      %vm202 = vmand %vm168, %vm186
      %vm203 = vmand %vm169, %vm187
      %vm204 = vmand %vm170, %vm188
      %vm205 = vmand %vm171, %vm189
      %vm206 = vmand %vm172, %vm190
      %vm207 = vmand %vm173, %vm191
      %vm208 = vmand %vm174, %vm192
      %vm209 = vmand %vm175, %vm193
      %v210 = vsel %vm194, 1.0, 0.0
      %v211 = vsel %vm195, 1.0, 0.0
      %v212 = vsel %vm196, 1.0, 0.0
      %v213 = vsel %vm197, 1.0, 0.0
      %v214 = vsel %vm198, 1.0, 0.0
      %v215 = vsel %vm199, 1.0, 0.0
      %v216 = vsel %vm200, 1.0, 0.0
      %v217 = vsel %vm201, 1.0, 0.0
      %v218 = vsel %vm202, 1.0, 0.0
      %v219 = vsel %vm203, 1.0, 0.0
      %v220 = vsel %vm204, 1.0, 0.0
      %v221 = vsel %vm205, 1.0, 0.0
      %v222 = vsel %vm206, 1.0, 0.0
      %v223 = vsel %vm207, 1.0, 0.0
      %v224 = vsel %vm208, 1.0, 0.0
      %v225 = vsel %vm209, 1.0, 0.0
      %v226 = vmul.u32 %v141, 16
      %vm227 = vcmp.ge.s32.totalorder %v158, %v226
      %v228 = vadd.s32 %v141, 1
      %v229 = vmul.u32 %v228, 16
      %vm230 = vcmp.lt.s32.totalorder %v158, %v229
      %vm231 = vmand %vm227, %vm230
      %v232 = vsel %vm231, 1.0, 0.0
      %233 = vmatprep.subr.mxu0 0.0
      %234 = vmatpush1.msra.mxu0 %v210
      %235 = vmatprep.subr.mxu0 0.0
      %236 = vmatpush1.msra.mxu0 %v211
      %237 = vmatprep.subr.mxu0 0.0
      %238 = vmatpush1.msra.mxu0 %v212
      %239 = vmatprep.subr.mxu0 0.0
      %240 = vmatpush1.msra.mxu0 %v213
      %241 = vmatprep.subr.mxu0 0.0
      %242 = vmatpush1.msra.mxu0 %v214
      %243 = vmatprep.subr.mxu0 0.0
      %244 = vmatpush1.msra.mxu0 %v215
      %245 = vmatprep.subr.mxu0 0.0
      %246 = vmatpush1.msra.mxu0 %v216
      %247 = vmatprep.subr.mxu0 0.0
      %248 = vmatpush1.msra.mxu0 %v217
      %249 = vmatprep.subr.mxu0 0.0
      %250 = vmatpush1.msra.mxu0 %v218
      %251 = vmatprep.subr.mxu0 0.0
      %252 = vmatpush1.msra.mxu0 %v219
      %253 = vmatprep.subr.mxu0 0.0
      %254 = vmatpush1.msra.mxu0 %v220
      %255 = vmatprep.subr.mxu0 0.0
      %256 = vmatpush1.msra.mxu0 %v221
      %257 = vmatprep.subr.mxu0 0.0
      %258 = vmatpush1.msra.mxu0 %v222
      %259 = vmatprep.subr.mxu0 0.0
      %260 = vmatpush1.msra.mxu0 %v223
      %261 = vmatprep.subr.mxu0 0.0
      %262 = vmatpush1.msra.mxu0 %v224
      %263 = vmatprep.subr.mxu0 0.0
      %264 = vmatpush1.msra.mxu0 %v225
      %265 = vmatprep.subr.mxu0 0.0
      %266 = vmatpush1.msra.mxu0 0.0
      %267 = vmatprep.subr.mxu0 0.0
      %268 = vmatpush1.msra.mxu0 0.0
      %269 = vmatprep.subr.mxu0 0.0
      %270 = vmatpush1.msra.mxu0 0.0
      %271 = vmatprep.subr.mxu0 0.0
      %272 = vmatpush1.msra.mxu0 0.0
      %273 = vmatprep.subr.mxu0 0.0
      %274 = vmatpush1.msra.mxu0 0.0
      %275 = vmatprep.subr.mxu0 0.0
      %276 = vmatpush1.msra.mxu0 0.0
      %277 = vmatprep.subr.mxu0 0.0
      %278 = vmatpush1.msra.mxu0 0.0
      %279 = vmatprep.subr.mxu0 0.0
      %280 = vmatpush1.msra.mxu0 0.0
      %281 = vmatprep.subr.mxu0 0.0
      %282 = vmatpush1.msra.mxu0 0.0
      %283 = vmatprep.subr.mxu0 0.0
      %284 = vmatpush1.msra.mxu0 0.0
      %285 = vmatprep.subr.mxu0 0.0
      %286 = vmatpush1.msra.mxu0 0.0
      %287 = vmatprep.subr.mxu0 0.0
      %288 = vmatpush1.msra.mxu0 0.0
      %289 = vmatprep.subr.mxu0 0.0
      %290 = vmatpush1.msra.mxu0 0.0
      %291 = vmatprep.subr.mxu0 0.0
      %292 = vmatpush1.msra.mxu0 0.0
      %293 = vmatprep.subr.mxu0 0.0
      %294 = vmatpush1.msra.mxu0 0.0
      %295 = vmatprep.subr.mxu0 0.0
      %296 = vmatpush1.msra.mxu0 0.0
      %297 = vmatprep.mubr.f32.mxu0 0.0
      %298 = vmatmul.mubr.f32.gmra.mrb[0].mxu0 %v139
      %v299 = vpop.f32.mrb[0].mxu0
      %v300 = vadd.f32 0.0, %v299
      %v301 = vpop.f32.mrb[0].mxu0
      %302 = vdwg.mxu0
      %v303 = vmul.f32 %v139, %v139
      %304 = vmatprep.subr.mxu0 0.0
      %305 = vmatpush1.msra.mxu0 %v210
      %306 = vmatprep.subr.mxu0 0.0
      %307 = vmatpush1.msra.mxu0 %v211
      %308 = vmatprep.subr.mxu0 0.0
      %309 = vmatpush1.msra.mxu0 %v212
      %310 = vmatprep.subr.mxu0 0.0
      %311 = vmatpush1.msra.mxu0 %v213
      %312 = vmatprep.subr.mxu0 0.0
      %313 = vmatpush1.msra.mxu0 %v214
      %314 = vmatprep.subr.mxu0 0.0
      %315 = vmatpush1.msra.mxu0 %v215
      %316 = vmatprep.subr.mxu0 0.0
      %317 = vmatpush1.msra.mxu0 %v216
      %318 = vmatprep.subr.mxu0 0.0
      %319 = vmatpush1.msra.mxu0 %v217
      %320 = vmatprep.subr.mxu0 0.0
      %321 = vmatpush1.msra.mxu0 %v218
      %322 = vmatprep.subr.mxu0 0.0
      %323 = vmatpush1.msra.mxu0 %v219
      %324 = vmatprep.subr.mxu0 0.0
      %325 = vmatpush1.msra.mxu0 %v220
      %326 = vmatprep.subr.mxu0 0.0
      %327 = vmatpush1.msra.mxu0 %v221
      %328 = vmatprep.subr.mxu0 0.0
      %329 = vmatpush1.msra.mxu0 %v222
      %330 = vmatprep.subr.mxu0 0.0
      %331 = vmatpush1.msra.mxu0 %v223
      %332 = vmatprep.subr.mxu0 0.0
      %333 = vmatpush1.msra.mxu0 %v224
      %334 = vmatprep.subr.mxu0 0.0
      %335 = vmatpush1.msra.mxu0 %v225
      %336 = vmatprep.subr.mxu0 0.0
      %337 = vmatpush1.msra.mxu0 0.0
      %338 = vmatprep.subr.mxu0 0.0
      %339 = vmatpush1.msra.mxu0 0.0
      %340 = vmatprep.subr.mxu0 0.0
      %341 = vmatpush1.msra.mxu0 0.0
      %342 = vmatprep.subr.mxu0 0.0
      %343 = vmatpush1.msra.mxu0 0.0
      %344 = vmatprep.subr.mxu0 0.0
      %345 = vmatpush1.msra.mxu0 0.0
      %346 = vmatprep.subr.mxu0 0.0
      %347 = vmatpush1.msra.mxu0 0.0
      %348 = vmatprep.subr.mxu0 0.0
      %349 = vmatpush1.msra.mxu0 0.0
      %350 = vmatprep.subr.mxu0 0.0
      %351 = vmatpush1.msra.mxu0 0.0
      %352 = vmatprep.subr.mxu0 0.0
      %353 = vmatpush1.msra.mxu0 0.0
      %354 = vmatprep.subr.mxu0 0.0
      %355 = vmatpush1.msra.mxu0 0.0
      %356 = vmatprep.subr.mxu0 0.0
      %357 = vmatpush1.msra.mxu0 0.0
      %358 = vmatprep.subr.mxu0 0.0
      %359 = vmatpush1.msra.mxu0 0.0
      %360 = vmatprep.subr.mxu0 0.0
      %361 = vmatpush1.msra.mxu0 0.0
      %362 = vmatprep.subr.mxu0 0.0
      %363 = vmatpush1.msra.mxu0 0.0
      %364 = vmatprep.subr.mxu0 0.0
      %365 = vmatpush1.msra.mxu0 0.0
      %366 = vmatprep.subr.mxu0 0.0
      %367 = vmatpush1.msra.mxu0 0.0
      %368 = vmatprep.mubr.f32.mxu0 0.0
      %369 = vmatmul.mubr.f32.gmra.mrb[0].mxu0 %v303
      %v370 = vpop.f32.mrb[0].mxu0
      %v371 = vadd.f32 0.0, %v370
      %v372 = vpop.f32.mrb[0].mxu0
      %373 = vdwg.mxu0
      %v374 = vmul.f32 %v300, 0.0625
      %v375 = vmul.f32 %v371, 0.0625
      %v376 = vmul.f32 %v374, %v374
      %v377 = vsub.f32 %v375, %v376
      %v378 = vmax.f32 %v377, 0.0
      %v379 = vadd.f32 %v378, 1e-05
      %v380 = vrsqrt.pop %v379
      %vm381 = vcmask 64512
      %v383 = vsel %vm381, %v380, 0
      %385 = vmatprep.subr.mxu0 0.0
      %386 = vmatpush1.msra.mxu0 %v232
      %387 = vmatprep.subr.mxu0 0.0
      %388 = vmatpush1.msra.mxu0 0.0
      %389 = vmatprep.subr.mxu0 0.0
      %390 = vmatpush1.msra.mxu0 0.0
      %391 = vmatprep.subr.mxu0 0.0
      %392 = vmatpush1.msra.mxu0 0.0
      %393 = vmatprep.subr.mxu0 0.0
      %394 = vmatpush1.msra.mxu0 0.0
      %395 = vmatprep.subr.mxu0 0.0
      %396 = vmatpush1.msra.mxu0 0.0
      %397 = vmatprep.subr.mxu0 0.0
      %398 = vmatpush1.msra.mxu0 0.0
      %399 = vmatprep.subr.mxu0 0.0
      %400 = vmatpush1.msra.mxu0 0.0
      %401 = vmatprep.subr.mxu0 0.0
      %402 = vmatpush1.msra.mxu0 0.0
      %403 = vmatprep.subr.mxu0 0.0
      %404 = vmatpush1.msra.mxu0 0.0
      %405 = vmatprep.subr.mxu0 0.0
      %406 = vmatpush1.msra.mxu0 0.0
      %407 = vmatprep.subr.mxu0 0.0
      %408 = vmatpush1.msra.mxu0 0.0
      %409 = vmatprep.subr.mxu0 0.0
      %410 = vmatpush1.msra.mxu0 0.0
      %411 = vmatprep.subr.mxu0 0.0
      %412 = vmatpush1.msra.mxu0 0.0
      %413 = vmatprep.subr.mxu0 0.0
      %414 = vmatpush1.msra.mxu0 0.0
      %415 = vmatprep.subr.mxu0 0.0
      %416 = vmatpush1.msra.mxu0 0.0
      %417 = vmatprep.subr.mxu0 0.0
      %418 = vmatpush1.msra.mxu0 0.0
      %419 = vmatprep.subr.mxu0 0.0
      %420 = vmatpush1.msra.mxu0 0.0
      %421 = vmatprep.subr.mxu0 0.0
      %422 = vmatpush1.msra.mxu0 0.0
      %423 = vmatprep.subr.mxu0 0.0
      %424 = vmatpush1.msra.mxu0 0.0
      %425 = vmatprep.subr.mxu0 0.0
      %426 = vmatpush1.msra.mxu0 0.0
      %427 = vmatprep.subr.mxu0 0.0
      %428 = vmatpush1.msra.mxu0 0.0
      %429 = vmatprep.subr.mxu0 0.0
      %430 = vmatpush1.msra.mxu0 0.0
      %431 = vmatprep.subr.mxu0 0.0
      %432 = vmatpush1.msra.mxu0 0.0
      %433 = vmatprep.subr.mxu0 0.0
      %434 = vmatpush1.msra.mxu0 0.0
      %435 = vmatprep.subr.mxu0 0.0
      %436 = vmatpush1.msra.mxu0 0.0
      %437 = vmatprep.subr.mxu0 0.0
      %438 = vmatpush1.msra.mxu0 0.0
      %439 = vmatprep.subr.mxu0 0.0
      %440 = vmatpush1.msra.mxu0 0.0
      %441 = vmatprep.subr.mxu0 0.0
      %442 = vmatpush1.msra.mxu0 0.0
      %443 = vmatprep.subr.mxu0 0.0
      %444 = vmatpush1.msra.mxu0 0.0
      %445 = vmatprep.subr.mxu0 0.0
      %446 = vmatpush1.msra.mxu0 0.0
      %447 = vmatprep.subr.mxu0 0.0
      %448 = vmatpush1.msra.mxu0 0.0
      %449 = vmatprep.mubr.f32.mxu0 0.0
      %450 = vmatmul.mubr.f32.gmra.mrb[0].mxu0 %v383
      %v451 = vpop.f32.mrb[0].mxu0
      %v452 = vadd.f32 0.0, %v451
      %v453 = vpop.f32.mrb[0].mxu0
      %454 = vdwg.mxu0
      %v455 = vmul.f32 %v139, %v452
      %v456 = vld [vmem:[%s1] sm:$0x1]
      %v458 = vlaneseq
      %v459 = vshrl.u32 %v458, 7
      %v460 = vsub.s32 0, %v459
      %v461 = vrot.slane %v456, %v460
      %v463 = vmul.f32 %v455, %v461
      %464 = vst [vmem:[%s138] sm:$0xff] %v463
      %p465 = scmp.lt.s32.totalorder %s13, 1
      %s466 = scalar_select %p465, %s13, 1
      %s467 = smul.addr %s466, 8
      %s468 = scalar_lea.vmem %s2, %s467
      // Predicated region
      $region29: #{bias_free_layernorm.1} parent=27 // pred_check
        %p469 = pneg %p78
      $region30: #{bias_free_layernorm.1} parent=27 // pred_check_branch
        %471 = sbr.rel (%p469) target = $region32
      $region31: #{bias_free_layernorm.1} parent=27 // pred_region
        _
      $region32: #{bias_free_layernorm.1} parent=27 // pred_fallthru
        _
    $region28: #{bias_free_layernorm.1} parent=5 // pred_fallthru
      _
    %p472 = scmp.le.s32.totalorder 2, %s8
    // Predicated region
    $region33: #{bias_free_layernorm.1} parent=5 // pred_check
      %p473 = pneg %p472
    $region34: #{bias_free_layernorm.1} parent=5 // pred_check_branch
      %475 = sbr.rel (%p473) target = $region36
    $region35: #{bias_free_layernorm.1} parent=5 // pred_region
      %s476 = ssub.s32 %s8, 2
      // Predicated region
      $region37: #{bias_free_layernorm.1} parent=35 // pred_check
        %p477 = pneg %p84
      $region38: #{bias_free_layernorm.1} parent=35 // pred_check_branch
        %479 = sbr.rel (%p477) target = $region40
      $region39: #{bias_free_layernorm.1} parent=35 // pred_region
        %p480 = scmp.lt.s32.totalorder %s14, 1
        %s481 = scalar_select %p480, %s14, 1
        %s482 = smul.addr %s481, 8
        %s483 = scalar_lea.vmem %s2, %s482
      $region40: #{bias_free_layernorm.1} parent=35 // pred_fallthru
        _
    $region36: #{bias_free_layernorm.1} parent=5 // pred_fallthru
      _
  $region6: #{bias_free_layernorm.1} parent=0 // loop_footer
    %s12 = sadd.s32 1, %s8
  $region7: #{bias_free_layernorm.1} parent=0 // loop_footer_branch
    %7 = sbr.rel target = $region3
  $region8: #{bias_free_layernorm.1} parent=0 // loop_exit
    _

</llo_original>
